<compile_context>
chip_gen: v5e
topology: v5e:2x2
jax: 0.10.0
libtpu: 0.0.40
codegen_flags: <defaults>
</compile_context>

<pallas_src>
import functools

import jax
import jax.numpy as jnp
import numpy as np
from jax import lax
from jax.experimental import pallas as pl
from jax.experimental.pallas import tpu as pltpu


NEG_INF = -1e30  # large finite negative: exp(NEG_INF - max) == 0 in f32


def _sepc_head_kernel(cls_ref, w_ref, b_ref, label_ref, pred_ref, nll_ref, *,
                      num_classes):
    """Fused task head + per-row cross-entropy for one batch tile.

    cls_ref:   (TB, H)       CLS-pooled hidden states (encoder dtype)
    w_ref:     (H, C_pad)    linear weight, transposed + lane-padded
    b_ref:     (1, C_pad)    f32 bias, zero-padded lanes
    label_ref: (TB, 1) int32 class labels
    pred_ref:  (TB, C_pad)   f32 logits (lane-dense store)
    nll_ref:   (TB, 1)       f32 per-row negative log-likelihood
    """
    hidden = cls_ref[...]

    # Task head on the MXU: logits = hidden @ W + b (f32 accumulation).
    logits = jnp.dot(hidden, w_ref[...], preferred_element_type=jnp.float32)
    logits = logits + b_ref[...]                       # (TB, C_pad), lane-dense
    pred_ref[...] = logits

    # CrossEntropy per row, without materialising the full log-softmax:
    #   nll_i = logsumexp_{c < num_classes}(logits_i) - logits_i[label_i]
    col = lax.broadcasted_iota(jnp.int32, logits.shape, 1)       # (TB, C_pad)
    masked = jnp.where(col < num_classes, logits, NEG_INF)       # pad lanes off
    m = jnp.max(masked, axis=-1, keepdims=True)                  # (TB, 1)
    lse = jnp.log(jnp.sum(jnp.exp(masked - m), axis=-1, keepdims=True))
    picked = jnp.sum(jnp.where(col == label_ref[...], masked, 0.0),
                     axis=-1, keepdims=True)                     # (TB, 1)
    nll_ref[...] = (m + lse) - picked


def prepare_task_head_params(weight, bias, compute_dtype=None):
    """Init-time prep of the nn.Linear head params (hoisted out of the hot path).

    weight: (C, H)  PyTorch nn.Linear layout.   bias: (C,)
    Returns (w_pad [H, C_pad], b_pad [1, C_pad]) with C_pad a multiple of 128
    so logit stores are lane-dense.  Pass compute_dtype=jnp.bfloat16 with a
    bf16 encoder output for native MXU rate on v6e/v7x (accumulation stays f32
    inside the kernel).
    """
    C, H = weight.shape
    c_pad = max(128, ((C + 127) // 128) * 128)
    dtype = compute_dtype if compute_dtype is not None else weight.dtype
    w_t = jnp.asarray(weight, dtype).T                                  # (H, C)
    w_pad = jnp.zeros((H, c_pad), dtype).at[:, :C].set(w_t)             # (H, C_pad)
    b_pad = jnp.zeros((1, c_pad), jnp.float32).at[0, :C].set(
        jnp.asarray(bias, jnp.float32))                                 # (1, C_pad)
    return w_pad, b_pad


def _pick_batch_tile(batch):
    """Single tile for small B (per-grid-step overhead ~0.35us dominates);
    8-row-multiple tiles for large B so the "parallel" grid axis can be split
    across v7x's two TensorCores and per-tile DMAs double-buffer."""
    if batch <= 512 or batch % 8 != 0:
        return batch
    for tb in (512, 256, 128, 64, 32, 16, 8):
        if batch % tb == 0:
            return tb
    return batch


def sepc_forward(last_hidden_state, w_pad, b_pad, labels, num_classes):
    """Glue wrapper mirroring SEPC.forward (default config).

    last_hidden_state: (B, S, H)  encoder output (any float dtype)
    w_pad:             (H, C_pad) from prepare_task_head_params
    b_pad:             (1, C_pad) from prepare_task_head_params
    labels:            (B,)  int  class labels in [0, num_classes)
    Returns (pred, loss, hidden) matching the PyTorch module.
    """
    B, S, H = last_hidden_state.shape
    C_pad = w_pad.shape[1]

    # CLS pooling in the wrapper: a dense (B, H) slab fetched by the pallas
    # prologue concurrently with w/b/labels (no exposed in-kernel DMA).
    cls = last_hidden_state[:, 0, :]                       # == `hidden`
    lbl2 = labels.reshape(B, 1).astype(jnp.int32)

    tb = _pick_batch_tile(B)
    grid = (B // tb,)

    kernel = functools.partial(_sepc_head_kernel, num_classes=num_classes)

    pred_pad, nll = pl.pallas_call(
        kernel,
        out_shape=(
            jax.ShapeDtypeStruct((B, C_pad), jnp.float32),  # padded logits
            jax.ShapeDtypeStruct((B, 1), jnp.float32),      # per-row NLL
        ),
        grid=grid,
        in_specs=[
            pl.BlockSpec((tb, H), lambda i: (i, 0)),        # CLS hidden tile
            pl.BlockSpec((H, C_pad), lambda i: (0, 0)),     # W (shared)
            pl.BlockSpec((1, C_pad), lambda i: (0, 0)),     # b (shared)
            pl.BlockSpec((tb, 1), lambda i: (i, 0)),        # labels tile
        ],
        out_specs=(
            pl.BlockSpec((tb, C_pad), lambda i: (i, 0)),
            pl.BlockSpec((tb, 1), lambda i: (i, 0)),
        ),
        compiler_params=pltpu.CompilerParams(
            dimension_semantics=("parallel",)),
    )(cls, w_pad, b_pad, lbl2)

    # Mean reduction of CrossEntropyLoss finished in the wrapper (exact; keeps
    # the kernel grid-parallel with no cross-tile accumulator).
    loss = jnp.mean(nll)
    # Slice the lane-padded logits back to the real class count (cheap view).
    return pred_pad[:, :num_classes], loss, cls


if __name__ == "__main__":
    # Small synthetic shapes: batch=8, seq=16, hidden=32, num_classes=4
    B, S, H, C = 8, 16, 32, 4
    key = jax.random.PRNGKey(0)
    k_x, k_w, k_b, k_l = jax.random.split(key, 4)

    last_hidden_state = jax.random.normal(k_x, (B, S, H), dtype=jnp.float32)
    # Deterministic "TaskModule" linear parameters (PyTorch nn.Linear layout (C, H)).
    weight = jax.random.normal(k_w, (C, H), dtype=jnp.float32) * 0.05
    bias = jax.random.normal(k_b, (C,), dtype=jnp.float32) * 0.05
    labels = jax.random.randint(k_l, (B,), 0, C, dtype=jnp.int32)

    # Init-time (hoisted): transpose + lane-pad the head parameters once.
    w_pad, b_pad = prepare_task_head_params(weight, bias)

    pred, loss, hidden = sepc_forward(last_hidden_state, w_pad, b_pad, labels, C)
    jax.block_until_ready((pred, loss, hidden))

    # Pure-JAX reference for sanity.
    hidden_ref = last_hidden_state[:, 0, :]
    logits_ref = hidden_ref @ weight.T + bias
    logp_ref = jax.nn.log_softmax(logits_ref, axis=-1)
    loss_ref = -jnp.mean(logp_ref[jnp.arange(B), labels])

    assert np.allclose(np.asarray(hidden), np.asarray(hidden_ref), atol=1e-5)
    assert np.allclose(np.asarray(pred), np.asarray(logits_ref), atol=1e-5)
    assert np.allclose(float(loss), float(loss_ref), atol=1e-5)

    print("KERNEL_OK")
</pallas_src>

<mosaic_0001>
module attributes {stable_mosaic.version = 11 : i64} {
  func.func @_sepc_head_kernel(%arg0: i32, %arg1: memref<8x32xf32, #tpu.memory_space<vmem>>, %arg2: memref<32x128xf32, #tpu.memory_space<vmem>>, %arg3: memref<1x128xf32, #tpu.memory_space<vmem>>, %arg4: memref<8x1xi32, #tpu.memory_space<vmem>>, %arg5: memref<8x128xf32, #tpu.memory_space<vmem>>, %arg6: memref<8x1xf32, #tpu.memory_space<vmem>>) attributes {dimension_semantics = [#tpu.dimension_semantics<parallel>], iteration_bounds = array<i64: 1>, scalar_prefetch = 0 : i64, scratch_operands = 0 : i64, tpu.core_type = #tpu.core_type<tc>, window_params = [{transform_indices = @transform_0, window_bounds = array<i64: 8, 32>}, {pipeline_mode = #tpu.pipeline_mode<synchronous>, transform_indices = @transform_1, window_bounds = array<i64: 32, 128>}, {pipeline_mode = #tpu.pipeline_mode<synchronous>, transform_indices = @transform_2, window_bounds = array<i64: 1, 128>}, {transform_indices = @transform_3, window_bounds = array<i64: 8, 1>}, {transform_indices = @transform_4, window_bounds = array<i64: 8, 128>}, {transform_indices = @transform_5, window_bounds = array<i64: 8, 1>}]} {
    %c0 = arith.constant 0 : index
    %c0_0 = arith.constant 0 : index
    %0 = vector.load %arg1[%c0, %c0_0] : memref<8x32xf32, #tpu.memory_space<vmem>>, vector<8x32xf32>
    %c0_1 = arith.constant 0 : index
    %c0_2 = arith.constant 0 : index
    %1 = vector.load %arg2[%c0_1, %c0_2] : memref<32x128xf32, #tpu.memory_space<vmem>>, vector<32x128xf32>
    %cst = arith.constant dense<0.000000e+00> : vector<8x128xf32>
    %2 = tpu.matmul %0, %1, %cst {dimension_numbers = #tpu.dot_dimension_numbers<[1], [0], [0], [1], [0, 0, 1, 1], [], []>} : vector<8x32xf32>, vector<32x128xf32>, vector<8x128xf32> -> vector<8x128xf32>
    %c0_3 = arith.constant 0 : index
    %c0_4 = arith.constant 0 : index
    %3 = vector.load %arg3[%c0_3, %c0_4] : memref<1x128xf32, #tpu.memory_space<vmem>>, vector<1x128xf32>
    %4 = vector.broadcast %3 : vector<1x128xf32> to vector<8x128xf32>
    %5 = arith.addf %2, %4 : vector<8x128xf32>
    %c0_5 = arith.constant 0 : index
    %c0_6 = arith.constant 0 : index
    %6 = vector.load %arg5[%c0_5, %c0_6] : memref<8x128xf32, #tpu.memory_space<vmem>>, vector<8x128xf32>
    tpu.vector_store %arg5[%c0_5, %c0_6], %5 {strides = array<i32>} : memref<8x128xf32, #tpu.memory_space<vmem>>, vector<8x128xf32>,
    %7 = tpu.iota {dimensions = array<i32: 1>} : vector<8x128xi32>
    %c4_i32 = arith.constant 4 : i32
    %8 = vector.broadcast %c4_i32 : i32 to vector<8x128xi32>
    %9 = arith.cmpi slt, %7, %8 : vector<8x128xi32>
    %cst_7 = arith.constant -1.000000e+30 : f32
    %10 = vector.broadcast %cst_7 : f32 to vector<8x128xf32>
    %11 = arith.select %9, %5, %10 : vector<8x128xi1>, vector<8x128xf32>
    %cst_8 = arith.constant dense<0xFF800000> : vector<8xf32>
    %12 = vector.multi_reduction <maximumf>, %11, %cst_8 [1] : vector<8x128xf32> to vector<8xf32>
    %13 = vector.shape_cast %12 : vector<8xf32> to vector<8x1xf32>
    %14 = vector.broadcast %13 : vector<8x1xf32> to vector<8x128xf32>
    %15 = arith.subf %11, %14 : vector<8x128xf32>
    %16 = math.exp %15 : vector<8x128xf32>
    %cst_9 = arith.constant dense<0.000000e+00> : vector<8xf32>
    %17 = vector.multi_reduction <add>, %16, %cst_9 [1] : vector<8x128xf32> to vector<8xf32>
    %18 = vector.shape_cast %17 : vector<8xf32> to vector<8x1xf32>
    %19 = math.log %18 : vector<8x1xf32>
    %c0_10 = arith.constant 0 : index
    %c0_11 = arith.constant 0 : index
    %20 = vector.load %arg4[%c0_10, %c0_11] : memref<8x1xi32, #tpu.memory_space<vmem>>, vector<8x1xi32>
    %21 = vector.broadcast %20 : vector<8x1xi32> to vector<8x128xi32>
    %22 = arith.cmpi eq, %7, %21 : vector<8x128xi32>
    %cst_12 = arith.constant 0.000000e+00 : f32
    %23 = vector.broadcast %cst_12 : f32 to vector<8x128xf32>
    %24 = arith.select %22, %11, %23 : vector<8x128xi1>, vector<8x128xf32>
    %cst_13 = arith.constant dense<0.000000e+00> : vector<8xf32>
    %25 = vector.multi_reduction <add>, %24, %cst_13 [1] : vector<8x128xf32> to vector<8xf32>
    %26 = vector.shape_cast %25 : vector<8xf32> to vector<8x1xf32>
    %27 = arith.addf %13, %19 : vector<8x1xf32>
    %28 = arith.subf %27, %26 : vector<8x1xf32>
    %c0_14 = arith.constant 0 : index
    %c0_15 = arith.constant 0 : index
    %29 = vector.load %arg6[%c0_14, %c0_15] : memref<8x1xf32, #tpu.memory_space<vmem>>, vector<8x1xf32>
    tpu.vector_store %arg6[%c0_14, %c0_15], %28 {strides = array<i32>} : memref<8x1xf32, #tpu.memory_space<vmem>>, vector<8x1xf32>,
    return
  }
  func.func @transform_0(%arg0: i32) -> (i32, i32) {
    %c0_i32 = arith.constant 0 : i32
    %c0_i32_0 = arith.constant 0 : i32
    return %arg0, %c0_i32 : i32, i32
  }
  func.func @transform_1(%arg0: i32) -> (i32, i32) {
    %c0_i32 = arith.constant 0 : i32
    %c0_i32_0 = arith.constant 0 : i32
    %c0_i32_1 = arith.constant 0 : i32
    return %c0_i32, %c0_i32_0 : i32, i32
  }
  func.func @transform_2(%arg0: i32) -> (i32, i32) {
    %c0_i32 = arith.constant 0 : i32
    %c0_i32_0 = arith.constant 0 : i32
    %c0_i32_1 = arith.constant 0 : i32
    return %c0_i32, %c0_i32_0 : i32, i32
  }
  func.func @transform_3(%arg0: i32) -> (i32, i32) {
    %c0_i32 = arith.constant 0 : i32
    %c0_i32_0 = arith.constant 0 : i32
    return %arg0, %c0_i32 : i32, i32
  }
  func.func @transform_4(%arg0: i32) -> (i32, i32) {
    %c0_i32 = arith.constant 0 : i32
    %c0_i32_0 = arith.constant 0 : i32
    return %arg0, %c0_i32 : i32, i32
  }
  func.func @transform_5(%arg0: i32) -> (i32, i32) {
    %c0_i32 = arith.constant 0 : i32
    %c0_i32_0 = arith.constant 0 : i32
    return %arg0, %c0_i32 : i32, i32
  }
}

</mosaic_0001>

<llo_original>
// kernel: tpu_custom_call.1
$region0: #{tpu_custom_call.1}
  #allocation0 [shape = 'u32[]', space=smem, size = 0x4, offset = 0x4, fixed_abs, tag = 'smem constant byte address 0x4 - core index']
  #allocation1 [shape = 'u32[72,128]{1,0:T(1,128)}', space=vmem, size = 0x9000, scoped, tag = 'internal scratch']
  %s0 = inlined_call_operand.vmem [shape: f32[8,32], index: 0, kind: input, shape index: {}]
  %s1 = inlined_call_operand.hbm [shape: f32[32,128], index: 1, kind: input, shape index: {}]
  %s2 = inlined_call_operand.vmem [shape: f32[1,128], index: 2, kind: input, shape index: {}]
  %s3 = inlined_call_operand.vmem [shape: s32[8,1], index: 3, kind: input, shape index: {}]
  %s4 = inlined_call_operand.hbm [shape: f32[8,128], index: 4, kind: output, shape index: {0}]
  %s5 = inlined_call_operand.vmem [shape: f32[8,1], index: 5, kind: output, shape index: {1}]
  %6 = xla_tuple %s4, %s5
  %s7 = sld [smem:[#allocation0]]
  $region38: #{tpu_custom_call.1} parent=0
    _
  %s9 = ssub.s32 1, %s7
  %s10 = scalar_select 0, %s9, %s7
  $region1: #{tpu_custom_call.1} parent=0
    #allocation2 [shape = 'u8[16384]{0}', space=vmem, size = 0x4000, scoped, tag = 'input window, operand 1, single buffered']
    #allocation3 [shape = 's32[1]{0}', space=sflag, size = 0x4, scoped, tag = 'scoped memory for tpu_custom_call.1']
    #allocation4 [shape = 's32[1]{0}', space=sflag, size = 0x4, scoped, tag = 'scoped memory for tpu_custom_call.1']
    #allocation5 [shape = 'u8[4096]{0}', space=vmem, size = 0x1000, scoped, tag = 'output window, operand 0, single buffered']
    %11 = vsyncpa [#allocation3], 0
    %12 = vsyncpa [#allocation4], 0
    // Predicated region
    $region2: #{tpu_custom_call.1} parent=1 // pred_check
      _
    $region3: #{tpu_custom_call.1} parent=1 // pred_check_branch
      %14 = sbr.rel (0) target = $region5
    $region4: #{tpu_custom_call.1} parent=1 // pred_region
      _
    $region5: #{tpu_custom_call.1} parent=1 // pred_fallthru
      _
    // Predicated region
    $region6: #{tpu_custom_call.1} parent=1 // pred_check
      _
    $region7: #{tpu_custom_call.1} parent=1 // pred_check_branch
      %16 = sbr.rel (0) target = $region9
    $region8: #{tpu_custom_call.1} parent=1 // pred_region
      %18 = vsyncadd [#allocation3], 0
      %s19 = sshll.u32 %s1, 4
      %s20 = int_to_ptr.hbm [resolvable:$true] %s19
      %s21 = sshll.u32 [#allocation2], 4
      %s22 = int_to_ptr.vmem [resolvable:$true] %s21
      %27 = dma.hbm_to_vmem [thread:$0]  %s20, 512, %s22, [#allocation3], 128, 128, 8
    $region9: #{tpu_custom_call.1} parent=1 // pred_fallthru
      _
    // Predicated region
    $region10: #{tpu_custom_call.1} parent=1 // pred_check
      _
    $region11: #{tpu_custom_call.1} parent=1 // pred_check_branch
      %29 = sbr.rel (0) target = $region13
    $region12: #{tpu_custom_call.1} parent=1 // pred_region
      _
    $region13: #{tpu_custom_call.1} parent=1 // pred_fallthru
      _
    // Predicated region
    $region14: #{tpu_custom_call.1} parent=1 // pred_check
      _
    $region15: #{tpu_custom_call.1} parent=1 // pred_check_branch
      %31 = sbr.rel (0) target = $region17
    $region16: #{tpu_custom_call.1} parent=1 // pred_region
      _
    $region17: #{tpu_custom_call.1} parent=1 // pred_fallthru
      _
    // Predicated region
    $region18: #{tpu_custom_call.1} parent=1 // pred_check
      _
    $region19: #{tpu_custom_call.1} parent=1 // pred_check_branch
      %33 = sbr.rel (0) target = $region21
    $region20: #{tpu_custom_call.1} parent=1 // pred_region
      %35 = dma.done [#allocation3], 512
    $region21: #{tpu_custom_call.1} parent=1 // pred_fallthru
      _
    %v36 = vld [vmem:[%s0] sm:$0xff]
    %v37 = vld [vmem:[#allocation2] sm:$0xff]
    %v38 = vld [vmem:[#allocation2 + $0x8] sm:$0xff]
    %v39 = vld [vmem:[#allocation2 + $0x10] sm:$0xff]
    %v40 = vld [vmem:[#allocation2 + $0x18] sm:$0xff]
    %v41 = vld [vmem:[%s2] sm:$0x1]
    %v43 = vperm.slane %v41, 0
    %vm45 = vcmask 261120
    %v47 = vsel %vm45, %v36, 0
    %49 = vmatpush.msra.mxu0 0.0
    %50 = vmatpush.msra.mxu0 0.0
    %51 = vmatpush.msra.mxu0 0.0
    %52 = vmatpush.msra.mxu0 0.0
    %53 = vmatpush.msra.mxu0 0.0
    %54 = vmatpush.msra.mxu0 0.0
    %55 = vmatpush.msra.mxu0 0.0
    %56 = vmatpush.msra.mxu0 0.0
    %57 = vmatpush.msra.mxu0 0.0
    %58 = vmatpush.msra.mxu0 0.0
    %59 = vmatpush.msra.mxu0 0.0
    %60 = vmatpush.msra.mxu0 0.0
    %61 = vmatpush.msra.mxu0 %v40
    %62 = vmatpush.msra.mxu0 %v39
    %63 = vmatpush.msra.mxu0 %v38
    %64 = vmatpush.msra.mxu0 %v37
    %65 = vmatmul.f32.gmra.mxu0 %v47
    %v66 = vpop.f32.mrf.mxu0
    %v67 = vadd.f32 %v43, %v66
    %68 = vdwg.mxu0
    %69 = vst [vmem:[#allocation5] sm:$0xff] %v67
    %v70 = vlaneseq
    %v71 = vand.u32 %v70, 127
    %vm72 = vcmp.lt.s32.totalorder %v71, 4
    %v73 = vsel %vm72, %v67, -1e+30
    %74 = vmax.xlane.f32.xlu0 %v73
    %v75 = vpop.xlane.xlu0 %74
    %v76 = vsub.f32 %v73, %v75
    %v77 = vmul.f32 %v76, 1.442695
    %v78 = vpow.pop %v77
    %79 = vadd.xlane.f32.xlu0 %v78
    %v80 = vpop.xlane.xlu0 %79
    %v81 = vlog2.pop %v80
    %v82 = vmul.f32 %v81, 0.6931472
    %v83 = vld [vmem:[%s3] sm:$0xff]
    %84 = vset.pattern.permute.xlu0 0
    %85 = vperm.xlu0 %84, %v83
    %v86 = vpop.permute.xlu0 %85
    %vm87 = vcmp.eq.s32.totalorder %v71, %v86
    %v88 = vsel %vm87, %v73, 0.0
    %89 = vadd.xlane.f32.xlu0 %v88
    %v90 = vpop.xlane.xlu0 %89
    %v91 = vadd.f32 %v75, %v82
    %v92 = vsub.f32 %v91, %v90
    %vm93 = vcmask 7168
    %94 = vst.msk [vmem:[%s5] sm:$0xff] %vm93, %v92
    // Predicated region
    $region22: #{tpu_custom_call.1} parent=1 // pred_check
      _
    $region23: #{tpu_custom_call.1} parent=1 // pred_check_branch
      %96 = sbr.rel (0) target = $region25
    $region24: #{tpu_custom_call.1} parent=1 // pred_region
      %98 = vsyncadd [#allocation4], 0
      %s100 = sshll.u32 [#allocation5], 4
      %s101 = int_to_ptr.vmem [resolvable:$true] %s100
      %s102 = sshll.u32 %s4, 4
      %s103 = int_to_ptr.hbm [resolvable:$true] %s102
      %105 = dma.vmem_to_hbm [thread:$0]  %s101, 128, %s103, [#allocation4]
    $region25: #{tpu_custom_call.1} parent=1 // pred_fallthru
      _
    // Predicated region
    $region26: #{tpu_custom_call.1} parent=1 // pred_check
      _
    $region27: #{tpu_custom_call.1} parent=1 // pred_check_branch
      %107 = sbr.rel (0) target = $region29
    $region28: #{tpu_custom_call.1} parent=1 // pred_region
      _
    $region29: #{tpu_custom_call.1} parent=1 // pred_fallthru
      _
    // Predicated region
    $region30: #{tpu_custom_call.1} parent=1 // pred_check
      _
    $region31: #{tpu_custom_call.1} parent=1 // pred_check_branch
      %109 = sbr.rel (0) target = $region33
    $region32: #{tpu_custom_call.1} parent=1 // pred_region
      %111 = dma.done [#allocation4], 128
    $region33: #{tpu_custom_call.1} parent=1 // pred_fallthru
      _
    // Predicated region
    $region34: #{tpu_custom_call.1} parent=1 // pred_check
      _
    $region35: #{tpu_custom_call.1} parent=1 // pred_check_branch
      %113 = sbr.rel (0) target = $region37
    $region36: #{tpu_custom_call.1} parent=1 // pred_region
      _
    $region37: #{tpu_custom_call.1} parent=1 // pred_fallthru
      _
    %114 = vsyncpa [#allocation3], 1
    %115 = vsyncpa [#allocation4], 1

</llo_original>
